<compile_context>
chip_gen: v7x
topology: tpu7x:2x2x1
jax: 0.10.0
libtpu: 0.0.40
codegen_flags: <defaults>
</compile_context>

<pallas_src>
import jax
import jax.numpy as jnp
from jax.experimental import pallas as pl
from jax.experimental.pallas import tpu as pltpu

_LANE = 128
_MIN_TILE = 8192            # never shrink below this when chasing grid steps
_TARGET_GRID_STEPS = 8      # >= 4 pipelined steps per TensorCore on v7x
_VMEM_BUDGET = 24 << 20     # budget for double-buffered pipeline buffers
_VMEM_LIMIT = 32 << 20      # scoped VMEM limit (<= physical on v5e/v6e/v7x)


def _round_up(x, m):
    return ((x + m - 1) // m) * m


def _linkpred_kernel(xi_ref, xj_ref,
                     w0_ref, b0_ref,
                     w1_ref, b1_ref,
                     w2t_ref, b2_ref,
                     out_ref):
    mxu_dtype = w0_ref.dtype  # bf16 by default (wrapper pre-casts the weights)

    # Elementwise product in the input dtype: f32 inputs -> f32 VALU (v5e
    # safe); bf16 inputs (v6e/v7x opt-in) -> bf16 VALU, half the load traffic.
    x = xi_ref[...] * xj_ref[...]                             # (in_ch, tile)

    # Hidden layer 0: relu(W0 @ x + b0) -> (hidden, tile); bf16 MXU, f32 acc.
    h = jnp.dot(w0_ref[...], x.astype(mxu_dtype),
                preferred_element_type=jnp.float32)
    h = jnp.maximum(h + b0_ref[...], 0.0)

    # Hidden layer 1: relu(W1 @ h + b1) -> (hidden, tile)
    h = jnp.dot(w1_ref[...], h.astype(mxu_dtype),
                preferred_element_type=jnp.float32)
    h = jnp.maximum(h + b1_ref[...], 0.0)

    # Output layer: sigmoid(W2 @ h + b2) -> (out_ch, tile), lane-dense store.
    w2t = w2t_ref[...]                                        # (hidden, out_ch) f32
    if w2t.shape[1] == 1:
        # out_ch == 1: VPU multiply + sublane (XLU) reduction in f32; avoids
        # an MXU matmul whose M dimension would be 1.
        z = jnp.sum(h * w2t, axis=0, keepdims=True)           # (1, tile)
    else:
        z = jax.lax.dot_general(w2t.astype(mxu_dtype), h.astype(mxu_dtype),
                                (((0,), (0,)), ((), ())),
                                preferred_element_type=jnp.float32)
    z = z + b2_ref[...]
    out_ref[...] = jax.nn.sigmoid(z).astype(out_ref.dtype)


def _pick_tile(n, in_ch, out_ch, in_bytes, out_bytes, tile_n):
    # Per-edge VMEM: 2 inputs x 2 pipeline buffers + 1 output x 2 buffers.
    per_edge = 2 * 2 * in_ch * in_bytes + 2 * out_ch * out_bytes
    vmem_cap = max(_LANE, (_VMEM_BUDGET // per_edge) // _LANE * _LANE)
    tile = min(int(tile_n), vmem_cap, _round_up(n, _LANE))
    tile = max(_LANE, (tile // _LANE) * _LANE)
    grid_n = pl.cdiv(n, tile)
    # Prefer >= _TARGET_GRID_STEPS steps so v7x megacore gets >= 4 pipelined
    # steps per TensorCore, but keep per-step DMA large enough to amortize the
    # ~0.35 us per-grid-step overhead.
    if grid_n < _TARGET_GRID_STEPS:
        alt = max(_MIN_TILE, _round_up(pl.cdiv(n, _TARGET_GRID_STEPS), _LANE))
        if alt < tile:
            tile = alt
            grid_n = pl.cdiv(n, tile)
    return tile, grid_n


def link_predictor_forward_t(xi_t, xj_t, params, *, tile_n=32768,
                             mxu_dtype=jnp.bfloat16, out_dtype=jnp.float32):
    """LinkPredictor forward on pre-transposed inputs.

    xi_t, xj_t : (in_channels, N).  Producing these directly (optionally in
                 bf16) avoids any wrapper-side HBM pass over the inputs.
    params     : PyTorch-layout f32 weights: w0 (hidden,in), w1 (hidden,hidden),
                 w2 (out,hidden); biases b0/b1 (hidden,1), b2 (out,1).
    Returns (out_channels, N) probabilities in `out_dtype` (bf16 allowed to
    halve output writeback if the consumer accepts it).
    """
    in_ch, n = xi_t.shape
    hidden = params["w0"].shape[0]
    out_ch = params["w2"].shape[0]

    in_bytes = jnp.dtype(xi_t.dtype).itemsize
    out_bytes = jnp.dtype(out_dtype).itemsize
    tile, grid_n = _pick_tile(n, in_ch, out_ch, in_bytes, out_bytes, tile_n)

    # Hidden-layer weights are cast once for the MXU (tiny arrays); the
    # out_ch==1 head and all biases stay f32.
    w0 = params["w0"].astype(mxu_dtype)
    w1 = params["w1"].astype(mxu_dtype)
    w2t = jnp.transpose(params["w2"]).astype(jnp.float32)     # (hidden, out_ch)
    b0 = params["b0"].astype(jnp.float32)
    b1 = params["b1"].astype(jnp.float32)
    b2 = params["b2"].astype(jnp.float32)

    act_spec = lambda rows: pl.BlockSpec((rows, tile), lambda i: (0, i))
    # Constant index maps: weight/bias tiles are DMA'd once and stay resident.
    full_spec = lambda r, c: pl.BlockSpec((r, c), lambda i: (0, 0))

    grid_spec = pltpu.PrefetchScalarGridSpec(
        num_scalar_prefetch=0,
        grid=(grid_n,),
        in_specs=[
            act_spec(in_ch),               # x_i^T
            act_spec(in_ch),               # x_j^T
            full_spec(hidden, in_ch),      # w0
            full_spec(hidden, 1),          # b0
            full_spec(hidden, hidden),     # w1
            full_spec(hidden, 1),          # b1
            full_spec(hidden, out_ch),     # w2^T
            full_spec(out_ch, 1),          # b2
        ],
        out_specs=act_spec(out_ch),        # lane-dense (out_ch, tile) blocks
    )

    flops = (2 * n * (in_ch * hidden + hidden * hidden + hidden * out_ch)
             + n * (in_ch + 2 * hidden + out_ch))
    weight_bytes = 4 * (hidden * (in_ch + hidden + out_ch) + 2 * hidden + out_ch)
    cost = pl.CostEstimate(
        flops=int(flops),
        transcendentals=int(n * out_ch),
        bytes_accessed=int(2 * n * in_ch * in_bytes + n * out_ch * out_bytes
                           + weight_bytes))

    return pl.pallas_call(
        _linkpred_kernel,
        out_shape=jax.ShapeDtypeStruct((out_ch, n), out_dtype),
        grid_spec=grid_spec,
        compiler_params=pltpu.CompilerParams(
            dimension_semantics=("parallel",),
            vmem_limit_bytes=_VMEM_LIMIT),
        cost_estimate=cost,
    )(xi_t, xj_t, w0, b0, w1, b1, w2t, b2)


def link_predictor_forward(x_i, x_j, params, *, tile_n=32768, input_dtype=None,
                           mxu_dtype=jnp.bfloat16, out_dtype=jnp.float32):
    """LinkPredictor forward on PyTorch-layout (N, in_channels) inputs.

    Does one fused transpose (+ optional cast) per input to reach the
    (in_ch, N) kernel layout; no explicit padding (Pallas masks the partial
    last block).  Prefer `link_predictor_forward_t` when the producer can emit
    (in_ch, N) directly.  `input_dtype=jnp.bfloat16` is an opt-in quantization
    for v6e/v7x that halves input HBM traffic vs. the f32 PyTorch module.
    """
    dt = x_i.dtype if input_dtype is None else input_dtype
    xi_t = jnp.transpose(x_i).astype(dt)
    xj_t = jnp.transpose(x_j).astype(dt)
    out_t = link_predictor_forward_t(xi_t, xj_t, params, tile_n=tile_n,
                                     mxu_dtype=mxu_dtype, out_dtype=out_dtype)
    return jnp.transpose(out_t)            # (N, out_channels)


def init_params(key, in_channels, hidden_channels, out_channels):
    """PyTorch nn.Linear-style init in native (out_features, in_features) layout."""
    keys = jax.random.split(key, 6)

    def lin(kw, kb, fan_in, fan_out):
        bound = 1.0 / jnp.sqrt(jnp.float32(fan_in))
        w = jax.random.uniform(kw, (fan_out, fan_in), jnp.float32, -bound, bound)
        b = jax.random.uniform(kb, (fan_out, 1), jnp.float32, -bound, bound)
        return w, b

    w0, b0 = lin(keys[0], keys[1], in_channels, hidden_channels)
    w1, b1 = lin(keys[2], keys[3], hidden_channels, hidden_channels)
    w2, b2 = lin(keys[4], keys[5], hidden_channels, out_channels)
    return {"w0": w0, "b0": b0, "w1": w1, "b1": b1, "w2": w2, "b2": b2}


def _reference_forward(x_i, x_j, p, mxu_dtype=jnp.bfloat16):
    # Mirrors the kernel's precision strategy (bf16 MXU operands, f32
    # accumulation, f32 head/bias/relu math) so the self-test isolates the
    # kernel plumbing.  A strict-f32 PyTorch reference differs by O(1e-3) on
    # the sigmoid outputs due to the bf16 MXU operands.
    x = x_i.astype(jnp.float32) * x_j.astype(jnp.float32)
    h = jnp.dot(x.astype(mxu_dtype), p["w0"].T.astype(mxu_dtype),
                preferred_element_type=jnp.float32) + p["b0"].T
    h = jnp.maximum(h, 0.0)
    h = jnp.dot(h.astype(mxu_dtype), p["w1"].T.astype(mxu_dtype),
                preferred_element_type=jnp.float32) + p["b1"].T
    h = jnp.maximum(h, 0.0)
    z = jnp.sum(h[:, :, None] * p["w2"].T[None, :, :], axis=1) + p["b2"].T
    return jax.nn.sigmoid(z)


if __name__ == "__main__":
    # LinkPredictor(in_channels=32, hidden_channels=32, out_channels=1,
    #               num_layers=3, dropout=0.5) -- eval mode.
    # N is deliberately not a multiple of the 128-lane tile so the unpadded
    # partial-last-block path (masked boundary store) is exercised.
    N, IN_CH, HID, OUT_CH = 300, 32, 32, 1

    key = jax.random.PRNGKey(0)
    k_xi, k_xj, k_p = jax.random.split(key, 3)
    x_i = jax.random.normal(k_xi, (N, IN_CH), jnp.float32)
    x_j = jax.random.normal(k_xj, (N, IN_CH), jnp.float32)
    params = init_params(k_p, IN_CH, HID, OUT_CH)

    out = link_predictor_forward(x_i, x_j, params)
    out = jax.block_until_ready(out)

    ref = _reference_forward(x_i, x_j, params)
    assert out.shape == (N, OUT_CH), out.shape
    assert bool(jnp.isfinite(out).all()), "non-finite values leaked into output"
    err = float(jnp.max(jnp.abs(out - ref)))
    assert err < 1e-4, f"mismatch vs JAX reference: max|diff|={err}"

    print("KERNEL_OK")
</pallas_src>

<mosaic_0001>
module attributes {stable_mosaic.version = 11 : i64} {
  func.func @_linkpred_kernel(%arg0: i32, %arg1: memref<32x384xf32, #tpu.memory_space<vmem>>, %arg2: memref<32x384xf32, #tpu.memory_space<vmem>>, %arg3: memref<32x32xbf16, #tpu.memory_space<vmem>>, %arg4: memref<32x1xf32, #tpu.memory_space<vmem>>, %arg5: memref<32x32xbf16, #tpu.memory_space<vmem>>, %arg6: memref<32x1xf32, #tpu.memory_space<vmem>>, %arg7: memref<32x1xf32, #tpu.memory_space<vmem>>, %arg8: memref<1x1xf32, #tpu.memory_space<vmem>>, %arg9: memref<1x384xf32, #tpu.memory_space<vmem>>) attributes {dimension_semantics = [#tpu.dimension_semantics<parallel>], iteration_bounds = array<i64: 1>, scalar_prefetch = 0 : i64, scratch_operands = 0 : i64, tpu.core_type = #tpu.core_type<tc>, window_params = [{transform_indices = @transform_0, window_bounds = array<i64: 32, 384>}, {transform_indices = @transform_1, window_bounds = array<i64: 32, 384>}, {pipeline_mode = #tpu.pipeline_mode<synchronous>, transform_indices = @transform_2, window_bounds = array<i64: 32, 32>}, {pipeline_mode = #tpu.pipeline_mode<synchronous>, transform_indices = @transform_3, window_bounds = array<i64: 32, 1>}, {pipeline_mode = #tpu.pipeline_mode<synchronous>, transform_indices = @transform_4, window_bounds = array<i64: 32, 32>}, {pipeline_mode = #tpu.pipeline_mode<synchronous>, transform_indices = @transform_5, window_bounds = array<i64: 32, 1>}, {pipeline_mode = #tpu.pipeline_mode<synchronous>, transform_indices = @transform_6, window_bounds = array<i64: 32, 1>}, {pipeline_mode = #tpu.pipeline_mode<synchronous>, transform_indices = @transform_7, window_bounds = array<i64: 1, 1>}, {transform_indices = @transform_8, window_bounds = array<i64: 1, 384>}]} {
    %c0 = arith.constant 0 : index
    %c0_0 = arith.constant 0 : index
    %0 = vector.load %arg1[%c0, %c0_0] : memref<32x384xf32, #tpu.memory_space<vmem>>, vector<32x384xf32>
    %c0_1 = arith.constant 0 : index
    %c0_2 = arith.constant 0 : index
    %1 = vector.load %arg2[%c0_1, %c0_2] : memref<32x384xf32, #tpu.memory_space<vmem>>, vector<32x384xf32>
    %2 = arith.mulf %0, %1 : vector<32x384xf32>
    %c0_3 = arith.constant 0 : index
    %c0_4 = arith.constant 0 : index
    %3 = vector.load %arg3[%c0_3, %c0_4] : memref<32x32xbf16, #tpu.memory_space<vmem>>, vector<32x32xbf16>
    %4 = arith.truncf %2 : vector<32x384xf32> to vector<32x384xbf16>
    %cst = arith.constant dense<0.000000e+00> : vector<32x384xf32>
    %5 = tpu.matmul %3, %4, %cst {dimension_numbers = #tpu.dot_dimension_numbers<[1], [0], [0], [1], [0, 0, 1, 1], [], []>} : vector<32x32xbf16>, vector<32x384xbf16>, vector<32x384xf32> -> vector<32x384xf32>
    %c0_5 = arith.constant 0 : index
    %c0_6 = arith.constant 0 : index
    %6 = vector.load %arg4[%c0_5, %c0_6] : memref<32x1xf32, #tpu.memory_space<vmem>>, vector<32x1xf32>
    %7 = vector.broadcast %6 : vector<32x1xf32> to vector<32x384xf32>
    %8 = arith.addf %5, %7 : vector<32x384xf32>
    %cst_7 = arith.constant 0.000000e+00 : f32
    %9 = vector.broadcast %cst_7 : f32 to vector<32x384xf32>
    %10 = arith.maximumf %8, %9 : vector<32x384xf32>
    %c0_8 = arith.constant 0 : index
    %c0_9 = arith.constant 0 : index
    %11 = vector.load %arg5[%c0_8, %c0_9] : memref<32x32xbf16, #tpu.memory_space<vmem>>, vector<32x32xbf16>
    %12 = arith.truncf %10 : vector<32x384xf32> to vector<32x384xbf16>
    %cst_10 = arith.constant dense<0.000000e+00> : vector<32x384xf32>
    %13 = tpu.matmul %11, %12, %cst_10 {dimension_numbers = #tpu.dot_dimension_numbers<[1], [0], [0], [1], [0, 0, 1, 1], [], []>} : vector<32x32xbf16>, vector<32x384xbf16>, vector<32x384xf32> -> vector<32x384xf32>
    %c0_11 = arith.constant 0 : index
    %c0_12 = arith.constant 0 : index
    %14 = vector.load %arg6[%c0_11, %c0_12] : memref<32x1xf32, #tpu.memory_space<vmem>>, vector<32x1xf32>
    %15 = vector.broadcast %14 : vector<32x1xf32> to vector<32x384xf32>
    %16 = arith.addf %13, %15 : vector<32x384xf32>
    %cst_13 = arith.constant 0.000000e+00 : f32
    %17 = vector.broadcast %cst_13 : f32 to vector<32x384xf32>
    %18 = arith.maximumf %16, %17 : vector<32x384xf32>
    %c0_14 = arith.constant 0 : index
    %c0_15 = arith.constant 0 : index
    %19 = vector.load %arg7[%c0_14, %c0_15] : memref<32x1xf32, #tpu.memory_space<vmem>>, vector<32x1xf32>
    %20 = vector.broadcast %19 : vector<32x1xf32> to vector<32x384xf32>
    %21 = arith.mulf %18, %20 : vector<32x384xf32>
    %cst_16 = arith.constant dense<0.000000e+00> : vector<384xf32>
    %22 = vector.multi_reduction <add>, %21, %cst_16 [0] : vector<32x384xf32> to vector<384xf32>
    %23 = vector.shape_cast %22 : vector<384xf32> to vector<1x384xf32>
    %c0_17 = arith.constant 0 : index
    %c0_18 = arith.constant 0 : index
    %24 = vector.load %arg8[%c0_17, %c0_18] : memref<1x1xf32, #tpu.memory_space<vmem>>, vector<1x1xf32>
    %25 = vector.broadcast %24 : vector<1x1xf32> to vector<1x384xf32>
    %26 = arith.addf %23, %25 : vector<1x384xf32>
    %27 = arith.negf %26 : vector<1x384xf32>
    %28 = math.exp %27 : vector<1x384xf32>
    %cst_19 = arith.constant 1.000000e+00 : f32
    %29 = vector.broadcast %cst_19 : f32 to vector<1x384xf32>
    %30 = arith.addf %29, %28 : vector<1x384xf32>
    %31 = arith.divf %29, %30 : vector<1x384xf32>
    %c0_20 = arith.constant 0 : index
    %c0_21 = arith.constant 0 : index
    %32 = vector.load %arg9[%c0_20, %c0_21] : memref<1x384xf32, #tpu.memory_space<vmem>>, vector<1x384xf32>
    tpu.vector_store %arg9[%c0_20, %c0_21], %31 {strides = array<i32>} : memref<1x384xf32, #tpu.memory_space<vmem>>, vector<1x384xf32>,
    return
  }
  func.func @transform_0(%arg0: i32) -> (i32, i32) {
    %c0_i32 = arith.constant 0 : i32
    %c0_i32_0 = arith.constant 0 : i32
    return %c0_i32, %arg0 : i32, i32
  }
  func.func @transform_1(%arg0: i32) -> (i32, i32) {
    %c0_i32 = arith.constant 0 : i32
    %c0_i32_0 = arith.constant 0 : i32
    return %c0_i32, %arg0 : i32, i32
  }
  func.func @transform_2(%arg0: i32) -> (i32, i32) {
    %c0_i32 = arith.constant 0 : i32
    %c0_i32_0 = arith.constant 0 : i32
    %c0_i32_1 = arith.constant 0 : i32
    return %c0_i32, %c0_i32_0 : i32, i32
  }
  func.func @transform_3(%arg0: i32) -> (i32, i32) {
    %c0_i32 = arith.constant 0 : i32
    %c0_i32_0 = arith.constant 0 : i32
    %c0_i32_1 = arith.constant 0 : i32
    return %c0_i32, %c0_i32_0 : i32, i32
  }
  func.func @transform_4(%arg0: i32) -> (i32, i32) {
    %c0_i32 = arith.constant 0 : i32
    %c0_i32_0 = arith.constant 0 : i32
    %c0_i32_1 = arith.constant 0 : i32
    return %c0_i32, %c0_i32_0 : i32, i32
  }
  func.func @transform_5(%arg0: i32) -> (i32, i32) {
    %c0_i32 = arith.constant 0 : i32
    %c0_i32_0 = arith.constant 0 : i32
    %c0_i32_1 = arith.constant 0 : i32
    return %c0_i32, %c0_i32_0 : i32, i32
  }
  func.func @transform_6(%arg0: i32) -> (i32, i32) {
    %c0_i32 = arith.constant 0 : i32
    %c0_i32_0 = arith.constant 0 : i32
    %c0_i32_1 = arith.constant 0 : i32
    return %c0_i32, %c0_i32_0 : i32, i32
  }
  func.func @transform_7(%arg0: i32) -> (i32, i32) {
    %c0_i32 = arith.constant 0 : i32
    %c0_i32_0 = arith.constant 0 : i32
    %c0_i32_1 = arith.constant 0 : i32
    return %c0_i32, %c0_i32_0 : i32, i32
  }
  func.func @transform_8(%arg0: i32) -> (i32, i32) {
    %c0_i32 = arith.constant 0 : i32
    %c0_i32_0 = arith.constant 0 : i32
    return %c0_i32, %arg0 : i32, i32
  }
}

</mosaic_0001>

<llo_original>
// kernel: tpu_custom_call.1
$region0: #{tpu_custom_call.1}
  #allocation0 [shape = 'u32[]', space=smem, size = 0x4, offset = 0x4, fixed_abs, tag = 'smem constant byte address 0x4 - core index']
  #allocation1 [shape = 'u32[144,128]{1,0:T(1,128)}', space=vmem, size = 0x12000, scoped, tag = 'internal scratch']
  #allocation2 [shape = 'f32[1,1]{1,0:T(1,128)S(1)}', space=vmem, size = 0x200, scoped, tag = 'scoped memory for tpu_custom_call.1']
  %s0 = inlined_call_operand.vmem [shape: f32[32,300], index: 0, kind: input, shape index: {}]
  %s1 = inlined_call_operand.hbm [shape: f32[32,300], index: 1, kind: input, shape index: {}]
  %s2 = inlined_call_operand.hbm [shape: bf16[32,32], index: 2, kind: input, shape index: {}]
  %s3 = inlined_call_operand.vmem [shape: f32[32,1], index: 3, kind: input, shape index: {}]
  %s4 = inlined_call_operand.vmem [shape: bf16[32,32], index: 4, kind: input, shape index: {}]
  %s5 = inlined_call_operand.vmem [shape: f32[32,1], index: 5, kind: input, shape index: {}]
  %s6 = inlined_call_operand.vmem [shape: f32[32,1], index: 6, kind: input, shape index: {}]
  %s7 = inlined_call_operand.<no memory space> [shape: f32[1,1], index: 7, kind: input, shape index: {}]
  %s8 = inlined_call_operand.hbm [shape: f32[1,300], index: 8, kind: output, shape index: {}]
  %s9 = sld [smem:[#allocation0]]
  $region50: #{tpu_custom_call.1} parent=0
    _
  %s11 = ssub.s32 1, %s9
  %s12 = scalar_select 0, %s11, %s9
  %v13 = vstv %s7
  %14 = vst [vmem:[#allocation2] sm:$0x1] %v13
  $region1: #{tpu_custom_call.1} parent=0
    #allocation3 [shape = 'u8[49152]{0}', space=vmem, size = 0xc000, scoped, tag = 'input window, operand 1, single buffered']
    #allocation4 [shape = 's32[1]{0}', space=sflag, size = 0x4, scoped, tag = 'scoped memory for tpu_custom_call.1']
    #allocation5 [shape = 's32[1]{0}', space=sflag, size = 0x4, scoped, tag = 'scoped memory for tpu_custom_call.1']
    #allocation6 [shape = 'u8[8192]{0}', space=vmem, size = 0x2000, scoped, tag = 'input window, operand 2, single buffered']
    #allocation7 [shape = 's32[1]{0}', space=sflag, size = 0x4, scoped, tag = 'scoped memory for tpu_custom_call.1']
    #allocation8 [shape = 'u8[1536]{0}', space=vmem, size = 0x800, scoped, tag = 'output window, operand 0, single buffered']
    %15 = vsyncpa [#allocation4], 0
    %16 = vsyncpa [#allocation7], 0
    %17 = vsyncpa [#allocation5], 0
    // Predicated region
    $region2: #{tpu_custom_call.1} parent=1 // pred_check
      _
    $region3: #{tpu_custom_call.1} parent=1 // pred_check_branch
      %19 = sbr.rel (0) target = $region5
    $region4: #{tpu_custom_call.1} parent=1 // pred_region
      _
    $region5: #{tpu_custom_call.1} parent=1 // pred_fallthru
      _
    // Predicated region
    $region6: #{tpu_custom_call.1} parent=1 // pred_check
      _
    $region7: #{tpu_custom_call.1} parent=1 // pred_check_branch
      %21 = sbr.rel (0) target = $region9
    $region8: #{tpu_custom_call.1} parent=1 // pred_region
      %s23 = ssub.s32 1536, 1536
      %24 = vsyncadd [#allocation4], %s23
      %s25 = sshll.u32 [#allocation3], 4
      %s26 = int_to_ptr.vmem [resolvable:$true] %s25
      %31 = dma.hbm_to_vmem [thread:$0]  %s1, 1536, %s26, [#allocation4], 384, 384, 24
    $region9: #{tpu_custom_call.1} parent=1 // pred_fallthru
      _
    // Predicated region
    $region10: #{tpu_custom_call.1} parent=1 // pred_check
      _
    $region11: #{tpu_custom_call.1} parent=1 // pred_check_branch
      %33 = sbr.rel (0) target = $region13
    $region12: #{tpu_custom_call.1} parent=1 // pred_region
      %s35 = ssub.s32 256, 256
      %36 = vsyncadd [#allocation7], %s35
      %s37 = sshll.u32 [#allocation6], 4
      %s38 = int_to_ptr.vmem [resolvable:$true] %s37
      %43 = dma.hbm_to_vmem [thread:$0]  %s2, 256, %s38, [#allocation7], 64, 64, 4
    $region13: #{tpu_custom_call.1} parent=1 // pred_fallthru
      _
    // Predicated region
    $region14: #{tpu_custom_call.1} parent=1 // pred_check
      _
    $region15: #{tpu_custom_call.1} parent=1 // pred_check_branch
      %45 = sbr.rel (0) target = $region17
    $region16: #{tpu_custom_call.1} parent=1 // pred_region
      _
    $region17: #{tpu_custom_call.1} parent=1 // pred_fallthru
      _
    // Predicated region
    $region18: #{tpu_custom_call.1} parent=1 // pred_check
      _
    $region19: #{tpu_custom_call.1} parent=1 // pred_check_branch
      %47 = sbr.rel (0) target = $region21
    $region20: #{tpu_custom_call.1} parent=1 // pred_region
      _
    $region21: #{tpu_custom_call.1} parent=1 // pred_fallthru
      _
    // Predicated region
    $region22: #{tpu_custom_call.1} parent=1 // pred_check
      _
    $region23: #{tpu_custom_call.1} parent=1 // pred_check_branch
      %49 = sbr.rel (0) target = $region25
    $region24: #{tpu_custom_call.1} parent=1 // pred_region
      _
    $region25: #{tpu_custom_call.1} parent=1 // pred_fallthru
      _
    // Predicated region
    $region26: #{tpu_custom_call.1} parent=1 // pred_check
      _
    $region27: #{tpu_custom_call.1} parent=1 // pred_check_branch
      %51 = sbr.rel (0) target = $region29
    $region28: #{tpu_custom_call.1} parent=1 // pred_region
      _
    $region29: #{tpu_custom_call.1} parent=1 // pred_fallthru
      _
    // Predicated region
    $region30: #{tpu_custom_call.1} parent=1 // pred_check
      _
    $region31: #{tpu_custom_call.1} parent=1 // pred_check_branch
      %53 = sbr.rel (0) target = $region33
    $region32: #{tpu_custom_call.1} parent=1 // pred_region
      _
    $region33: #{tpu_custom_call.1} parent=1 // pred_fallthru
      _
    // Predicated region
    $region34: #{tpu_custom_call.1} parent=1 // pred_check
      _
    $region35: #{tpu_custom_call.1} parent=1 // pred_check_branch
      %55 = sbr.rel (0) target = $region37
    $region36: #{tpu_custom_call.1} parent=1 // pred_region
      %56 = dma.done [#allocation4], 1536
    $region37: #{tpu_custom_call.1} parent=1 // pred_fallthru
      _
    // Predicated region
    $region38: #{tpu_custom_call.1} parent=1 // pred_check
      _
    $region39: #{tpu_custom_call.1} parent=1 // pred_check_branch
      %58 = sbr.rel (0) target = $region41
    $region40: #{tpu_custom_call.1} parent=1 // pred_region
      %59 = dma.done [#allocation7], 256
    $region41: #{tpu_custom_call.1} parent=1 // pred_fallthru
      _
    %v61 = vld [vmem:[%s0] sm:$0xff]
    %v62 = vld [vmem:[%s0 + $0x8] sm:$0xff]
    %v63 = vld [vmem:[%s0 + $0x10] sm:$0xff]
    %v64 = vld [vmem:[%s0 + $0x18] sm:$0xff]
    %v65 = vld [vmem:[%s0 + $0x20] sm:$0xff]
    %v66 = vld [vmem:[%s0 + $0x28] sm:$0xff]
    %v67 = vld [vmem:[%s0 + $0x30] sm:$0xff]
    %v68 = vld [vmem:[%s0 + $0x38] sm:$0xff]
    %v69 = vld [vmem:[%s0 + $0x40] sm:$0xff]
    %v70 = vld [vmem:[%s0 + $0x48] sm:$0xff]
    %v71 = vld [vmem:[%s0 + $0x50] sm:$0xff]
    %v72 = vld [vmem:[%s0 + $0x58] sm:$0xff]
    %v73 = vld [vmem:[#allocation3] sm:$0xff]
    %v74 = vld [vmem:[#allocation3 + $0x8] sm:$0xff]
    %v75 = vld [vmem:[#allocation3 + $0x10] sm:$0xff]
    %v76 = vld [vmem:[#allocation3 + $0x18] sm:$0xff]
    %v77 = vld [vmem:[#allocation3 + $0x20] sm:$0xff]
    %v78 = vld [vmem:[#allocation3 + $0x28] sm:$0xff]
    %v79 = vld [vmem:[#allocation3 + $0x30] sm:$0xff]
    %v80 = vld [vmem:[#allocation3 + $0x38] sm:$0xff]
    %v81 = vld [vmem:[#allocation3 + $0x40] sm:$0xff]
    %v82 = vld [vmem:[#allocation3 + $0x48] sm:$0xff]
    %v83 = vld [vmem:[#allocation3 + $0x50] sm:$0xff]
    %v84 = vld [vmem:[#allocation3 + $0x58] sm:$0xff]
    %v85 = vmul.f32 %v61, %v73
    %v86 = vmul.f32 %v62, %v74
    %v87 = vmul.f32 %v63, %v75
    %v88 = vmul.f32 %v64, %v76
    %v89 = vmul.f32 %v65, %v77
    %v90 = vmul.f32 %v66, %v78
    %v91 = vmul.f32 %v67, %v79
    %v92 = vmul.f32 %v68, %v80
    %v93 = vmul.f32 %v69, %v81
    %v94 = vmul.f32 %v70, %v82
    %v95 = vmul.f32 %v71, %v83
    %v96 = vmul.f32 %v72, %v84
    %v97 = vld [vmem:[#allocation6] sm:$0xf]
    %v98 = vld [vmem:[#allocation6 + $0x4] sm:$0xf]
    %v99 = vld [vmem:[#allocation6 + $0x8] sm:$0xf]
    %v100 = vld [vmem:[#allocation6 + $0xc] sm:$0xf]
    %v101 = vpack.c.bf16 %v88, %v85
    %v102 = vpack.c.bf16 %v89, %v86
    %v103 = vpack.c.bf16 %v90, %v87
    %v104 = vpack.c.bf16 %v94, %v91
    %v105 = vpack.c.bf16 %v95, %v92
    %v106 = vpack.c.bf16 %v96, %v93
    %v107 = vld [vmem:[%s3] sm:$0xff]
    %v108 = vld [vmem:[%s3 + $0x8] sm:$0xff]
    %v109 = vld [vmem:[%s3 + $0x10] sm:$0xff]
    %v110 = vld [vmem:[%s3 + $0x18] sm:$0xff]
    %112 = vset.pattern.permute.xlu0 0
    %113 = vperm.xlu0 %112, %v107
    %v114 = vpop.permute.xlu0 %113
    %117 = vset.pattern.permute.xlu0 0
    %118 = vperm.xlu0 %117, %v108
    %v119 = vpop.permute.xlu0 %118
    %122 = vset.pattern.permute.xlu0 0
    %123 = vperm.xlu0 %122, %v109
    %v124 = vpop.permute.xlu0 %123
    %127 = vset.pattern.permute.xlu0 0
    %128 = vperm.xlu0 %127, %v110
    %v129 = vpop.permute.xlu0 %128
    %v135 = vunpack.c.l.b16 %v97
    %v136 = vunpack.c.l.b16 %v98
    %v137 = vunpack.c.l.b16 %v99
    %v138 = vunpack.c.l.b16 %v100
    %v139 = vpack.c.b16 %v136, %v135
    %v140 = vpack.c.b16 %v138, %v137
    %vm141 = vcmask 261120
    %v143 = vsel %vm141, %v139, 0
    %v146 = vsel %vm141, %v140, 0
    %148 = vmatprep.subr.bf16.mxu0 %v102
    %149 = vmatpush1.bf16.msra.mxu0 %v101
    %150 = vmatprep.subr.bf16.mxu0 %v105
    %151 = vmatpush1.bf16.msra.mxu0 %v104
    %152 = vmatprep.subr.bf16.mxu0 0
    %153 = vmatpush1.bf16.msra.mxu0 0
    %154 = vmatprep.subr.bf16.mxu0 0
    %155 = vmatpush1.bf16.msra.mxu0 0
    %156 = vmatprep.subr.bf16.mxu0 0
    %157 = vmatpush1.bf16.msra.mxu0 0
    %158 = vmatprep.subr.bf16.mxu0 0
    %159 = vmatpush1.bf16.msra.mxu0 0
    %160 = vmatprep.subr.bf16.mxu0 0
    %161 = vmatpush1.bf16.msra.mxu0 0
    %162 = vmatprep.subr.bf16.mxu0 0
    %163 = vmatpush1.bf16.msra.mxu0 0
    %164 = vmatprep.subr.bf16.mxu0 0
    %165 = vmatpush1.bf16.msra.mxu0 0
    %166 = vmatprep.subr.bf16.mxu0 0
    %167 = vmatpush1.bf16.msra.mxu0 0
    %168 = vmatprep.subr.bf16.mxu0 0
    %169 = vmatpush1.bf16.msra.mxu0 0
    %170 = vmatprep.subr.bf16.mxu0 0
    %171 = vmatpush1.bf16.msra.mxu0 0
    %172 = vmatprep.subr.bf16.mxu0 0
    %173 = vmatpush1.bf16.msra.mxu0 0
    %174 = vmatprep.subr.bf16.mxu0 0
    %175 = vmatpush1.bf16.msra.mxu0 0
    %176 = vmatprep.subr.bf16.mxu0 0
    %177 = vmatpush1.bf16.msra.mxu0 0
    %178 = vmatprep.subr.bf16.mxu0 0
    %179 = vmatpush1.bf16.msra.mxu0 0
    %180 = vmatprep.mubr.bf16.mxu0 0
    %181 = vmatmul.mubr.bf16.gmra.mrb[0].mxu0 %v143
    %v182 = vpop.f32.mrb[0].mxu0
    %v183 = vadd.f32 %v114, %v182
    %v184 = vpop.f32.mrb[0].mxu0
    %v185 = vadd.f32 %v114, %v184
    %v186 = vpop.f32.mrb[0].mxu0
    %v187 = vadd.f32 %v119, %v186
    %v188 = vpop.f32.mrb[0].mxu0
    %v189 = vadd.f32 %v119, %v188
    %190 = vmatprep.mubr.bf16.mxu0 0
    %191 = vmatmul.mubr.bf16.gmra.mrb[0].mxu0 %v146
    %v192 = vpop.f32.mrb[0].mxu0
    %v193 = vadd.f32 %v124, %v192
    %v194 = vpop.f32.mrb[0].mxu0
    %v195 = vadd.f32 %v124, %v194
    %v196 = vpop.f32.mrb[0].mxu0
    %v197 = vadd.f32 %v129, %v196
    %v198 = vpop.f32.mrb[0].mxu0
    %v199 = vadd.f32 %v129, %v198
    %200 = vdwg.mxu0
    %201 = vmatprep.subr.bf16.mxu0 0
    %202 = vmatpush1.bf16.msra.mxu0 %v103
    %203 = vmatprep.subr.bf16.mxu0 0
    %204 = vmatpush1.bf16.msra.mxu0 %v106
    %205 = vmatprep.subr.bf16.mxu0 0
    %206 = vmatpush1.bf16.msra.mxu0 0
    %207 = vmatprep.subr.bf16.mxu0 0
    %208 = vmatpush1.bf16.msra.mxu0 0
    %209 = vmatprep.subr.bf16.mxu0 0
    %210 = vmatpush1.bf16.msra.mxu0 0
    %211 = vmatprep.subr.bf16.mxu0 0
    %212 = vmatpush1.bf16.msra.mxu0 0
    %213 = vmatprep.subr.bf16.mxu0 0
    %214 = vmatpush1.bf16.msra.mxu0 0
    %215 = vmatprep.subr.bf16.mxu0 0
    %216 = vmatpush1.bf16.msra.mxu0 0
    %217 = vmatprep.subr.bf16.mxu0 0
    %218 = vmatpush1.bf16.msra.mxu0 0
    %219 = vmatprep.subr.bf16.mxu0 0
    %220 = vmatpush1.bf16.msra.mxu0 0
    %221 = vmatprep.subr.bf16.mxu0 0
    %222 = vmatpush1.bf16.msra.mxu0 0
    %223 = vmatprep.subr.bf16.mxu0 0
    %224 = vmatpush1.bf16.msra.mxu0 0
    %225 = vmatprep.subr.bf16.mxu0 0
    %226 = vmatpush1.bf16.msra.mxu0 0
    %227 = vmatprep.subr.bf16.mxu0 0
    %228 = vmatpush1.bf16.msra.mxu0 0
    %229 = vmatprep.subr.bf16.mxu0 0
    %230 = vmatpush1.bf16.msra.mxu0 0
    %231 = vmatprep.subr.bf16.mxu0 0
    %232 = vmatpush1.bf16.msra.mxu0 0
    %233 = vmatprep.mubr.bf16.mxu0 0
    %234 = vmatmul.mubr.bf16.gmra.mrb[0].mxu0 %v143
    %v235 = vpop.f32.mrb[0].mxu0
    %v236 = vadd.f32 %v114, %v235
    %v237 = vpop.f32.mrb[0].mxu0
    %v238 = vpop.f32.mrb[0].mxu0
    %v239 = vadd.f32 %v119, %v238
    %v240 = vpop.f32.mrb[0].mxu0
    %241 = vmatprep.mubr.bf16.mxu0 0
    %242 = vmatmul.mubr.bf16.gmra.mrb[0].mxu0 %v146
    %v243 = vpop.f32.mrb[0].mxu0
    %v244 = vadd.f32 %v124, %v243
    %v245 = vpop.f32.mrb[0].mxu0
    %v246 = vpop.f32.mrb[0].mxu0
    %v247 = vadd.f32 %v129, %v246
    %v248 = vpop.f32.mrb[0].mxu0
    %249 = vdwg.mxu0
    %v250 = vmax.f32 %v183, 0.0
    %v251 = vmax.f32 %v185, 0.0
    %v252 = vmax.f32 %v236, 0.0
    %v253 = vmax.f32 %v187, 0.0
    %v254 = vmax.f32 %v189, 0.0
    %v255 = vmax.f32 %v239, 0.0
    %v256 = vmax.f32 %v193, 0.0
    %v257 = vmax.f32 %v195, 0.0
    %v258 = vmax.f32 %v244, 0.0
    %v259 = vmax.f32 %v197, 0.0
    %v260 = vmax.f32 %v199, 0.0
    %v261 = vmax.f32 %v247, 0.0
    %v262 = vld [vmem:[%s4] sm:$0xf]
    %v263 = vld [vmem:[%s4 + $0x4] sm:$0xf]
    %v264 = vld [vmem:[%s4 + $0x8] sm:$0xf]
    %v265 = vld [vmem:[%s4 + $0xc] sm:$0xf]
    %v266 = vpack.c.bf16 %v253, %v250
    %v267 = vpack.c.bf16 %v254, %v251
    %v268 = vpack.c.bf16 %v255, %v252
    %v269 = vpack.c.bf16 %v259, %v256
    %v270 = vpack.c.bf16 %v260, %v257
    %v271 = vpack.c.bf16 %v261, %v258
    %v272 = vld [vmem:[%s5] sm:$0xff]
    %v273 = vld [vmem:[%s5 + $0x8] sm:$0xff]
    %v274 = vld [vmem:[%s5 + $0x10] sm:$0xff]
    %v275 = vld [vmem:[%s5 + $0x18] sm:$0xff]
    %277 = vset.pattern.permute.xlu0 0
    %278 = vperm.xlu0 %277, %v272
    %v279 = vpop.permute.xlu0 %278
    %282 = vset.pattern.permute.xlu0 0
    %283 = vperm.xlu0 %282, %v273
    %v284 = vpop.permute.xlu0 %283
    %287 = vset.pattern.permute.xlu0 0
    %288 = vperm.xlu0 %287, %v274
    %v289 = vpop.permute.xlu0 %288
    %292 = vset.pattern.permute.xlu0 0
    %293 = vperm.xlu0 %292, %v275
    %v294 = vpop.permute.xlu0 %293
    %v300 = vunpack.c.l.b16 %v262
    %v301 = vunpack.c.l.b16 %v263
    %v302 = vunpack.c.l.b16 %v264
    %v303 = vunpack.c.l.b16 %v265
    %v304 = vpack.c.b16 %v301, %v300
    %v305 = vpack.c.b16 %v303, %v302
    %v307 = vsel %vm141, %v304, 0
    %v310 = vsel %vm141, %v305, 0
    %312 = vmatprep.subr.bf16.mxu0 %v267
    %313 = vmatpush1.bf16.msra.mxu0 %v266
    %314 = vmatprep.subr.bf16.mxu0 %v270
    %315 = vmatpush1.bf16.msra.mxu0 %v269
    %316 = vmatprep.subr.bf16.mxu0 0
    %317 = vmatpush1.bf16.msra.mxu0 0
    %318 = vmatprep.subr.bf16.mxu0 0
    %319 = vmatpush1.bf16.msra.mxu0 0
    %320 = vmatprep.subr.bf16.mxu0 0
    %321 = vmatpush1.bf16.msra.mxu0 0
    %322 = vmatprep.subr.bf16.mxu0 0
    %323 = vmatpush1.bf16.msra.mxu0 0
    %324 = vmatprep.subr.bf16.mxu0 0
    %325 = vmatpush1.bf16.msra.mxu0 0
    %326 = vmatprep.subr.bf16.mxu0 0
    %327 = vmatpush1.bf16.msra.mxu0 0
    %328 = vmatprep.subr.bf16.mxu0 0
    %329 = vmatpush1.bf16.msra.mxu0 0
    %330 = vmatprep.subr.bf16.mxu0 0
    %331 = vmatpush1.bf16.msra.mxu0 0
    %332 = vmatprep.subr.bf16.mxu0 0
    %333 = vmatpush1.bf16.msra.mxu0 0
    %334 = vmatprep.subr.bf16.mxu0 0
    %335 = vmatpush1.bf16.msra.mxu0 0
    %336 = vmatprep.subr.bf16.mxu0 0
    %337 = vmatpush1.bf16.msra.mxu0 0
    %338 = vmatprep.subr.bf16.mxu0 0
    %339 = vmatpush1.bf16.msra.mxu0 0
    %340 = vmatprep.subr.bf16.mxu0 0
    %341 = vmatpush1.bf16.msra.mxu0 0
    %342 = vmatprep.subr.bf16.mxu0 0
    %343 = vmatpush1.bf16.msra.mxu0 0
    %344 = vmatprep.mubr.bf16.mxu0 0
    %345 = vmatmul.mubr.bf16.gmra.mrb[0].mxu0 %v307
    %v346 = vpop.f32.mrb[0].mxu0
    %v347 = vadd.f32 %v279, %v346
    %v348 = vpop.f32.mrb[0].mxu0
    %v349 = vadd.f32 %v279, %v348
    %v350 = vpop.f32.mrb[0].mxu0
    %v351 = vadd.f32 %v284, %v350
    %v352 = vpop.f32.mrb[0].mxu0
    %v353 = vadd.f32 %v284, %v352
    %354 = vmatprep.mubr.bf16.mxu0 0
    %355 = vmatmul.mubr.bf16.gmra.mrb[0].mxu0 %v310
    %v356 = vpop.f32.mrb[0].mxu0
    %v357 = vadd.f32 %v289, %v356
    %v358 = vpop.f32.mrb[0].mxu0
    %v359 = vadd.f32 %v289, %v358
    %v360 = vpop.f32.mrb[0].mxu0
    %v361 = vadd.f32 %v294, %v360
    %v362 = vpop.f32.mrb[0].mxu0
    %v363 = vadd.f32 %v294, %v362
    %364 = vdwg.mxu0
    %365 = vmatprep.subr.bf16.mxu0 0
    %366 = vmatpush1.bf16.msra.mxu0 %v268
    %367 = vmatprep.subr.bf16.mxu0 0
    %368 = vmatpush1.bf16.msra.mxu0 %v271
    %369 = vmatprep.subr.bf16.mxu0 0
    %370 = vmatpush1.bf16.msra.mxu0 0
    %371 = vmatprep.subr.bf16.mxu0 0
    %372 = vmatpush1.bf16.msra.mxu0 0
    %373 = vmatprep.subr.bf16.mxu0 0
    %374 = vmatpush1.bf16.msra.mxu0 0
    %375 = vmatprep.subr.bf16.mxu0 0
    %376 = vmatpush1.bf16.msra.mxu0 0
    %377 = vmatprep.subr.bf16.mxu0 0
    %378 = vmatpush1.bf16.msra.mxu0 0
    %379 = vmatprep.subr.bf16.mxu0 0
    %380 = vmatpush1.bf16.msra.mxu0 0
    %381 = vmatprep.subr.bf16.mxu0 0
    %382 = vmatpush1.bf16.msra.mxu0 0
    %383 = vmatprep.subr.bf16.mxu0 0
    %384 = vmatpush1.bf16.msra.mxu0 0
    %385 = vmatprep.subr.bf16.mxu0 0
    %386 = vmatpush1.bf16.msra.mxu0 0
    %387 = vmatprep.subr.bf16.mxu0 0
    %388 = vmatpush1.bf16.msra.mxu0 0
    %389 = vmatprep.subr.bf16.mxu0 0
    %390 = vmatpush1.bf16.msra.mxu0 0
    %391 = vmatprep.subr.bf16.mxu0 0
    %392 = vmatpush1.bf16.msra.mxu0 0
    %393 = vmatprep.subr.bf16.mxu0 0
    %394 = vmatpush1.bf16.msra.mxu0 0
    %395 = vmatprep.subr.bf16.mxu0 0
    %396 = vmatpush1.bf16.msra.mxu0 0
    %397 = vmatprep.mubr.bf16.mxu0 0
    %398 = vmatmul.mubr.bf16.gmra.mrb[0].mxu0 %v307
    %v399 = vpop.f32.mrb[0].mxu0
    %v400 = vadd.f32 %v279, %v399
    %v401 = vpop.f32.mrb[0].mxu0
    %v402 = vpop.f32.mrb[0].mxu0
    %v403 = vadd.f32 %v284, %v402
    %v404 = vpop.f32.mrb[0].mxu0
    %405 = vmatprep.mubr.bf16.mxu0 0
    %406 = vmatmul.mubr.bf16.gmra.mrb[0].mxu0 %v310
    %v407 = vpop.f32.mrb[0].mxu0
    %v408 = vadd.f32 %v289, %v407
    %v409 = vpop.f32.mrb[0].mxu0
    %v410 = vpop.f32.mrb[0].mxu0
    %v411 = vadd.f32 %v294, %v410
    %v412 = vpop.f32.mrb[0].mxu0
    %413 = vdwg.mxu0
    %v414 = vmax.f32 %v347, 0.0
    %v415 = vmax.f32 %v349, 0.0
    %v416 = vmax.f32 %v400, 0.0
    %v417 = vmax.f32 %v351, 0.0
    %v418 = vmax.f32 %v353, 0.0
    %v419 = vmax.f32 %v403, 0.0
    %v420 = vmax.f32 %v357, 0.0
    %v421 = vmax.f32 %v359, 0.0
    %v422 = vmax.f32 %v408, 0.0
    %v423 = vmax.f32 %v361, 0.0
    %v424 = vmax.f32 %v363, 0.0
    %v425 = vmax.f32 %v411, 0.0
    %v426 = vld [vmem:[%s6] sm:$0xff]
    %v427 = vld [vmem:[%s6 + $0x8] sm:$0xff]
    %v428 = vld [vmem:[%s6 + $0x10] sm:$0xff]
    %v429 = vld [vmem:[%s6 + $0x18] sm:$0xff]
    %431 = vset.pattern.permute.xlu0 0
    %432 = vperm.xlu0 %431, %v426
    %v433 = vpop.permute.xlu0 %432
    %436 = vset.pattern.permute.xlu0 0
    %437 = vperm.xlu0 %436, %v427
    %v438 = vpop.permute.xlu0 %437
    %441 = vset.pattern.permute.xlu0 0
    %442 = vperm.xlu0 %441, %v428
    %v443 = vpop.permute.xlu0 %442
    %446 = vset.pattern.permute.xlu0 0
    %447 = vperm.xlu0 %446, %v429
    %v448 = vpop.permute.xlu0 %447
    %v450 = vmul.f32 %v414, %v433
    %v451 = vmul.f32 %v415, %v433
    %v452 = vmul.f32 %v416, %v433
    %v453 = vmul.f32 %v417, %v438
    %v454 = vmul.f32 %v418, %v438
    %v455 = vmul.f32 %v419, %v438
    %v456 = vmul.f32 %v420, %v443
    %v457 = vmul.f32 %v421, %v443
    %v458 = vmul.f32 %v422, %v443
    %v459 = vmul.f32 %v423, %v448
    %v460 = vmul.f32 %v424, %v448
    %v461 = vmul.f32 %v425, %v448
    %v462 = vadd.f32 %v450, %v453
    %v463 = vadd.f32 %v462, %v456
    %v464 = vadd.f32 %v463, %v459
    %v465 = vrot.slane %v464, 4
    %v466 = vadd.f32 %v464, %v465
    %v467 = vrot.slane %v466, 2
    %v468 = vadd.f32 %v466, %v467
    %v469 = vrot.slane %v468, 1
    %v470 = vadd.f32 %v468, %v469
    %v471 = vadd.f32 %v451, %v454
    %v472 = vadd.f32 %v471, %v457
    %v473 = vadd.f32 %v472, %v460
    %v474 = vrot.slane %v473, 4
    %v475 = vadd.f32 %v473, %v474
    %v476 = vrot.slane %v475, 2
    %v477 = vadd.f32 %v475, %v476
    %v478 = vrot.slane %v477, 1
    %v479 = vadd.f32 %v477, %v478
    %v480 = vadd.f32 %v452, %v455
    %v481 = vadd.f32 %v480, %v458
    %v482 = vadd.f32 %v481, %v461
    %v483 = vrot.slane %v482, 4
    %v484 = vadd.f32 %v482, %v483
    %v485 = vrot.slane %v484, 2
    %v486 = vadd.f32 %v484, %v485
    %v487 = vrot.slane %v486, 1
    %v488 = vadd.f32 %v486, %v487
    %v489 = vld [vmem:[#allocation2] sm:$0x1]
    %491 = vset.pattern.permute.xlu0 0
    %492 = vperm.xlu0 %491, %v489
    %v493 = vpop.permute.xlu0 %492
    %v495 = vlaneseq
    %v496 = vshrl.u32 %v495, 7
    %v497 = vsub.s32 0, %v496
    %v498 = vrot.slane %v493, %v497
    %v499 = vadd.f32 %v470, %v498
    %v500 = vadd.f32 %v479, %v498
    %v501 = vadd.f32 %v488, %v498
    %v502 = vxor.u32 %v499, 2147483648
    %v503 = vxor.u32 %v500, 2147483648
    %v504 = vxor.u32 %v501, 2147483648
    %v505 = vmul.f32 %v502, 1.442695
    %v506 = vpow.pop %v505
    %v507 = vmul.f32 %v503, 1.442695
    %v508 = vpow.pop %v507
    %v509 = vmul.f32 %v504, 1.442695
    %v510 = vpow.pop %v509
    %v511 = vadd.f32 %v506, 1.0
    %v512 = vadd.f32 %v508, 1.0
    %v513 = vadd.f32 %v510, 1.0
    %v514 = vrcp.pop %v511
    %v515 = vmul.f32 1.0, %v514
    %v516 = vrcp.pop %v512
    %v517 = vmul.f32 1.0, %v516
    %v518 = vrcp.pop %v513
    %v519 = vmul.f32 1.0, %v518
    %v523 = vcombine.low %v515, %v517
    %v525 = vunpack.c.l.s4 1966171168
    %v526 = vunpack.c.0.s8 %v525
    %v527 = vlaneseq
    %v528 = vshrl.u32 %v527, 7
    %v529 = vsub.s32 %v526, %v528
    %v530 = vrot.slane %v523, %v529
    %v532 = vunpack.c.l.s4 1966171168
    %v533 = vunpack.c.0.s8 %v532
    %v534 = vlaneseq
    %v535 = vshrl.u32 %v534, 7
    %v536 = vsub.s32 %v533, %v535
    %v537 = vrot.slane %v519, %v536
    %v538 = vcombine.low %v530, %v537
    %v540 = vunpack.c.l.s4 1966171168
    %v541 = vunpack.c.0.s8 %v540
    %v542 = vlaneseq
    %v543 = vshrl.u32 %v542, 7
    %v544 = vsub.s32 %v541, %v543
    %v545 = vrot.slane %v538, %v544
    %v547 = vlaneseq
    %vm548 = vcmp.ge.s32.totalorder %v547, 0
    %vm549 = vcmp.lt.s32.totalorder %v547, 384
    %vm550 = vmand %vm548, %vm549
    %551 = vst.msk [vmem:[#allocation8] sm:$0x7] %vm550, %v545
    // Predicated region
    $region42: #{tpu_custom_call.1} parent=1 // pred_check
      _
    $region43: #{tpu_custom_call.1} parent=1 // pred_check_branch
      %553 = sbr.rel (0) target = $region45
    $region44: #{tpu_custom_call.1} parent=1 // pred_region
      %s555 = ssub.s32 48, 48
      %556 = vsyncadd [#allocation5], %s555
      %s558 = sshll.u32 [#allocation8], 4
      %s559 = int_to_ptr.vmem [resolvable:$true] %s558
      %561 = dma.vmem_to_hbm [thread:$0]  %s559, 48, %s8, [#allocation5]
    $region45: #{tpu_custom_call.1} parent=1 // pred_fallthru
      _
    // Predicated region
    $region46: #{tpu_custom_call.1} parent=1 // pred_check
      _
    $region47: #{tpu_custom_call.1} parent=1 // pred_check_branch
      %563 = sbr.rel (0) target = $region49
    $region48: #{tpu_custom_call.1} parent=1 // pred_region
      %564 = dma.done [#allocation5], 48
    $region49: #{tpu_custom_call.1} parent=1 // pred_fallthru
      _
    %565 = vsyncpa [#allocation4], 1
    %566 = vsyncpa [#allocation7], 1
    %567 = vsyncpa [#allocation5], 1

</llo_original>
